<compile_context>
chip_gen: v5e
topology: v5e:2x2
jax: 0.10.0
libtpu: 0.0.40
codegen_flags: <defaults>
</compile_context>

<pallas_src>
import jax
import jax.numpy as jnp
from jax import lax
from jax.experimental import pallas as pl
from jax.experimental.pallas import tpu as pltpu


def _round_up(x, m):
    return (x + m - 1) // m * m


def encoder_rnn_kernel(ids_ref, emb_hbm, wih_t_ref, whh_t_ref, b_ref,
                       out_ref, hid_ref, x_buf, gsem):
    """One time-chunk of the fused EncoderRNN forward.

    ids_ref   : (T*Bp,)        int32 token ids, time-major, batch padded to Bp (SMEM)
    emb_hbm   : (V, Hp)        f32 embedding table, lane-padded (HBM; manual DMA gather)
    wih_t_ref : (Hp, Hp)       W_ih^T, zero-padded (VMEM, resident)
    whh_t_ref : (Hp, Hp)       W_hh^T, zero-padded (VMEM, resident)
    b_ref     : (1, Hp)        b_ih + b_hh folded, zero-padded
    out_ref   : (Tc*Bp, Hp)    this chunk's per-step hidden states (time-major)
    hid_ref   : (Bp, Hp)       recurrent carry across chunks / final hidden state
    x_buf     : (2, Tc*Bp, Hp) double-buffered gathered embeddings (VMEM scratch)
    gsem      : (2,)           DMA semaphores, one per gather slot
    """
    c = pl.program_id(0)
    nc = pl.num_programs(0)
    rows = out_ref.shape[0]                       # Tc * Bp
    bp = hid_ref.shape[0]
    tc = rows // bp
    slot = c & 1

    def start_gather(chunk, slot_idx):
        base = chunk * rows
        @pl.loop(0, rows)
        def _(r):
            tok = ids_ref[base + r]
            pltpu.make_async_copy(emb_hbm.at[tok], x_buf.at[slot_idx, r],
                                  gsem.at[slot_idx]).start()

    def wait_gather(slot_idx):
        # Per-row waits so the byte counts match the per-row starts exactly.
        @pl.loop(0, rows)
        def _(r):
            pltpu.make_async_copy(emb_hbm.at[0], x_buf.at[slot_idx, r],
                                  gsem.at[slot_idx]).wait()

    @pl.when(c == 0)
    def _():
        hid_ref[...] = jnp.zeros_like(hid_ref)    # h0 = 0, as in nn.RNN
        start_gather(0, 0)                        # prime slot 0

    @pl.when(c + 1 < nc)
    def _():
        start_gather(c + 1, 1 - slot)             # prefetch next chunk (overlaps compute)

    wait_gather(slot)

    # Hoisted input projection for the whole chunk: ONE MXU matmul + folded bias,
    # written straight into the chunk's output block. Safe aliasing: each (Bp, Hp)
    # row group is read exactly once at its own step below, then overwritten by h_t,
    # and the block is only DMA'd back to HBM after this grid iteration completes.
    out_ref[...] = (
        jnp.dot(x_buf[slot], wih_t_ref[...], preferred_element_type=jnp.float32)
        + b_ref[...]
    )

    whh_t = whh_t_ref[...]                        # vreg-resident at Hp=128
    h0 = hid_ref[...]                             # carry from the previous chunk

    def step(tt, h):
        r = pl.multiple_of(tt * bp, 8)            # sublane-aligned (Bp = 8) row block
        pre = out_ref[pl.ds(r, bp), :] + jnp.dot(
            h, whh_t, preferred_element_type=jnp.float32)
        h_new = jnp.tanh(pre)
        out_ref[pl.ds(r, bp), :] = h_new          # lane-dense, unmasked (8,128) store
        return h_new                              # carry stays in vregs

    h_last = lax.fori_loop(0, tc, step, h0, unroll=True if tc <= 8 else 8)
    hid_ref[...] = h_last                         # one carry store per chunk


def encoder_rnn_forward(x_ids, emb_table, w_ih, w_hh, b_ih, b_hh, *, time_chunk=None):
    """Pallas implementation of EncoderRNN.forward (eval-mode dropout)."""
    B, T = x_ids.shape
    V, H = emb_table.shape
    Bp = _round_up(max(B, 1), 8)          # sublane padding
    Hp = _round_up(H, 128)                # lane padding

    if time_chunk is None:
        # Largest divisor of T keeping a chunk at <= 512 rows: per-chunk grid overhead
        # is negligible and two in-flight gathered chunks stay small in VMEM.
        max_tc = max(1, 512 // Bp)
        time_chunk = max(d for d in range(1, T + 1) if T % d == 0 and d <= max_tc)
    Tc = time_chunk
    assert T % Tc == 0, "time_chunk must divide the sequence length"
    num_chunks = T // Tc
    rows = Tc * Bp

    f32 = jnp.float32
    # Token ids, time-major, batch padded to Bp (padding rows gather token 0 and are
    # sliced away below). Scalar-prefetched into SMEM by the kernel.
    ids_tm = jnp.pad(jnp.transpose(x_ids), ((0, 0), (0, Bp - B)))
    ids_flat = ids_tm.reshape(T * Bp).astype(jnp.int32)

    # Zero-pad table / weights / bias to the (8,128)-friendly padded sizes. The extra
    # rows/cols are exact zeros, so padded hidden columns stay tanh(0)=0 and the real
    # columns are identical to the unpadded computation.
    emb_p = jnp.pad(emb_table.astype(f32), ((0, 0), (0, Hp - H)))
    wih_t = jnp.pad(jnp.transpose(w_ih).astype(f32), ((0, Hp - H), (0, Hp - H)))
    whh_t = jnp.pad(jnp.transpose(w_hh).astype(f32), ((0, Hp - H), (0, Hp - H)))
    bias = jnp.pad((b_ih + b_hh).astype(f32), (0, Hp - H)).reshape(1, Hp)
    # Dropout: identity (eval-mode semantics).
    # TODO(synk): training-mode dropout would be applied to the gathered rows in-kernel
    # (pltpu.prng_seed / prng_random_bits + 1/(1-p) scaling) before the projection.
    # TODO(synk): on v6e/v7x at production H, feed bf16 x / W_ih^T / W_hh^T to the MXU
    # (keep f32 accumulation) and loosen test tolerances accordingly.
    # TODO(synk): on v7x, add a leading batch-shard "parallel" grid axis to use both
    # TensorCores (recurrence is independent per batch row); pointless at B=2.

    out_flat, hidden = pl.pallas_call(
        encoder_rnn_kernel,
        out_shape=(
            jax.ShapeDtypeStruct((T * Bp, Hp), f32),   # hidden states (time-major flat)
            jax.ShapeDtypeStruct((Bp, Hp), f32),       # final hidden
        ),
        grid_spec=pltpu.PrefetchScalarGridSpec(
            num_scalar_prefetch=1,                     # ids -> SMEM
            grid=(num_chunks,),
            in_specs=[
                pl.BlockSpec(memory_space=pl.ANY),               # emb table (HBM, manual gather)
                pl.BlockSpec((Hp, Hp), lambda c, ids: (0, 0)),   # W_ih^T (resident)
                pl.BlockSpec((Hp, Hp), lambda c, ids: (0, 0)),   # W_hh^T (resident)
                pl.BlockSpec((1, Hp), lambda c, ids: (0, 0)),    # folded bias
            ],
            out_specs=(
                pl.BlockSpec((rows, Hp), lambda c, ids: (c, 0)),  # per-chunk writeback
                pl.BlockSpec((Bp, Hp), lambda c, ids: (0, 0)),    # resident carry / final h
            ),
            scratch_shapes=[
                pltpu.VMEM((2, rows, Hp), f32),        # double-buffered gathered x chunk
                pltpu.SemaphoreType.DMA((2,)),
            ],
        ),
        compiler_params=pltpu.CompilerParams(
            # Serial recurrence over chunks.
            dimension_semantics=("arbitrary",),
            # TODO(synk): set vmem_limit_bytes when chunk tiles grow (defaults 16/32/32 MiB
            # scoped vs 128/128/64 MiB physical on v5e/v6e/v7x).
        ),
    )(ids_flat, emb_p, wih_t, whh_t, bias)

    # (T*Bp, Hp) -> (B, T, H) batch_first; drop batch/lane padding.
    output = jnp.transpose(out_flat.reshape(T, Bp, Hp), (1, 0, 2))[:B, :, :H]
    hidden = hidden[:B, :H][None, :, :]                # (1, B, H) like nn.RNN
    return output, hidden


def _reference_forward(x_ids, emb_table, w_ih, w_hh, b_ih, b_hh):
    """Pure-JAX reference mirroring PyTorch nn.RNN(batch_first=True), eval dropout."""
    x_emb = jnp.take(emb_table, x_ids, axis=0)           # (B, T, H)
    B, T, H = x_emb.shape

    def step(h, x_t):
        h_new = jnp.tanh(x_t @ w_ih.T + b_ih + h @ w_hh.T + b_hh)
        return h_new, h_new

    h0 = jnp.zeros((B, H), jnp.float32)
    h_last, ys = lax.scan(step, h0, jnp.transpose(x_emb, (1, 0, 2)))
    return jnp.transpose(ys, (1, 0, 2)), h_last[None]


if __name__ == "__main__":
    # Small shapes consistent with the module: vocab=20, hidden=32, batch=2, seq=8.
    V, H, B, T = 20, 32, 2, 8
    key = jax.random.PRNGKey(0)
    k_emb, k_wih, k_whh, k_bih, k_bhh, k_ids = jax.random.split(key, 6)

    bound = 1.0 / jnp.sqrt(H)   # PyTorch nn.RNN default init range
    emb_table = jax.random.normal(k_emb, (V, H), jnp.float32)
    w_ih = jax.random.uniform(k_wih, (H, H), jnp.float32, -bound, bound)
    w_hh = jax.random.uniform(k_whh, (H, H), jnp.float32, -bound, bound)
    b_ih = jax.random.uniform(k_bih, (H,), jnp.float32, -bound, bound)
    b_hh = jax.random.uniform(k_bhh, (H,), jnp.float32, -bound, bound)

    x_ids = jax.random.randint(k_ids, (B, T), 0, V, jnp.int32)

    # time_chunk=4 -> grid=(2,): exercises the chunked pipeline, the double-buffered
    # in-kernel embedding gather, and the cross-chunk hidden carry.
    output, hidden = encoder_rnn_forward(x_ids, emb_table, w_ih, w_hh, b_ih, b_hh,
                                         time_chunk=4)
    jax.block_until_ready((output, hidden))

    ref_out, ref_hid = _reference_forward(x_ids, emb_table, w_ih, w_hh, b_ih, b_hh)
    assert output.shape == (B, T, H) and hidden.shape == (1, B, H)
    assert jnp.allclose(output, ref_out, atol=1e-5, rtol=1e-5)
    assert jnp.allclose(hidden, ref_hid, atol=1e-5, rtol=1e-5)

    print("KERNEL_OK")
</pallas_src>

<mosaic_0001>
module attributes {stable_mosaic.version = 11 : i64} {
  func.func @encoder_rnn_kernel(%arg0: i32, %arg1: memref<64xi32, #tpu.memory_space<smem>>, %arg2: memref<20x128xf32, #tpu.memory_space<any>>, %arg3: memref<128x128xf32, #tpu.memory_space<vmem>>, %arg4: memref<128x128xf32, #tpu.memory_space<vmem>>, %arg5: memref<1x128xf32, #tpu.memory_space<vmem>>, %arg6: memref<32x128xf32, #tpu.memory_space<vmem>>, %arg7: memref<8x128xf32, #tpu.memory_space<vmem>>, %arg8: memref<2x32x128xf32, #tpu.memory_space<vmem>>, %arg9: memref<2x!tpu.dma_semaphore, #tpu.memory_space<semaphore_mem>>) attributes {dimension_semantics = [#tpu.dimension_semantics<arbitrary>], iteration_bounds = array<i64: 2>, scalar_prefetch = 1 : i64, scratch_operands = 2 : i64, tpu.core_type = #tpu.core_type<tc>, window_params = [{}, {pipeline_mode = #tpu.pipeline_mode<synchronous>, transform_indices = @transform_1, window_bounds = array<i64: 128, 128>}, {pipeline_mode = #tpu.pipeline_mode<synchronous>, transform_indices = @transform_2, window_bounds = array<i64: 128, 128>}, {pipeline_mode = #tpu.pipeline_mode<synchronous>, transform_indices = @transform_3, window_bounds = array<i64: 1, 128>}, {transform_indices = @transform_4, window_bounds = array<i64: 32, 128>}, {pipeline_mode = #tpu.pipeline_mode<synchronous>, transform_indices = @transform_5, window_bounds = array<i64: 8, 128>}]} {
    %c1_i32 = arith.constant 1 : i32
    %0 = arith.andi %arg0, %c1_i32 : i32
    %c0_i32 = arith.constant 0 : i32
    %1 = arith.cmpi eq, %arg0, %c0_i32 : i32
    %2 = arith.extui %1 : i1 to i32
    %c0_i32_0 = arith.constant 0 : i32
    %3 = arith.cmpi ne, %2, %c0_i32_0 : i32
    scf.if %3 {
      %cst_37 = arith.constant 0.000000e+00 : f32
      %57 = vector.broadcast %cst_37 : f32 to vector<8x128xf32>
      %c0_38 = arith.constant 0 : index
      %c0_39 = arith.constant 0 : index
      %58 = vector.load %arg7[%c0_38, %c0_39] : memref<8x128xf32, #tpu.memory_space<vmem>>, vector<8x128xf32>
      tpu.vector_store %arg7[%c0_38, %c0_39], %57 {strides = array<i32>} : memref<8x128xf32, #tpu.memory_space<vmem>>, vector<8x128xf32>,
      %c0_i32_40 = arith.constant 0 : i32
      %c32_i32_41 = arith.constant 32 : i32
      %59 = arith.addi %c0_i32_40, %c32_i32_41 : i32
      %c1_i32_42 = arith.constant 1 : i32
      scf.for %arg10 = %c0_i32_40 to %59 step %c1_i32_42  : i32 {
        %c1_i32_44 = arith.constant 1 : i32
        %60 = arith.muli %arg10, %c1_i32_44 : i32
        %c0_i32_45 = arith.constant 0 : i32
        %61 = arith.addi %c0_i32_45, %60 : i32
        %c0_i32_46 = arith.constant 0 : i32
        %62 = arith.addi %c0_i32_46, %61 : i32
        %63 = arith.index_cast %62 : i32 to index
        %64 = memref.load %arg1[%63] : memref<64xi32, #tpu.memory_space<smem>>
        %c0_i32_47 = arith.constant 0 : i32
        %c0_i32_48 = arith.constant 0 : i32
        %c0_i32_49 = arith.constant 0 : i32
        %65 = tpu.memref_slice %arg2[%64, %c0_i32_49] : memref<20x128xf32, #tpu.memory_space<any>> -> memref<1x128xf32, #tpu.memory_space<any>>
        %66 = tpu.memref_squeeze %65 : memref<1x128xf32, #tpu.memory_space<any>> -> memref<128xf32, #tpu.memory_space<any>>
        %c0_i32_50 = arith.constant 0 : i32
        %67 = tpu.memref_slice %arg8[%c0_i32_47, %61, %c0_i32_50] : memref<2x32x128xf32, #tpu.memory_space<vmem>> -> memref<1x1x128xf32, #tpu.memory_space<vmem>>
        %68 = tpu.memref_squeeze %67 : memref<1x1x128xf32, #tpu.memory_space<vmem>> -> memref<128xf32, #tpu.memory_space<vmem>>
        %69 = tpu.memref_slice %arg9[%c0_i32_48] : memref<2x!tpu.dma_semaphore, #tpu.memory_space<semaphore_mem>> -> memref<1x!tpu.dma_semaphore, #tpu.memory_space<semaphore_mem>>
        %70 = tpu.memref_squeeze %69 : memref<1x!tpu.dma_semaphore, #tpu.memory_space<semaphore_mem>> -> memref<!tpu.dma_semaphore, #tpu.memory_space<semaphore_mem>>
        tpu.enqueue_dma source(%66 : memref<128xf32, #tpu.memory_space<any>>) target(%68 : memref<128xf32, #tpu.memory_space<vmem>>) target_semaphore(%70 : memref<!tpu.dma_semaphore, #tpu.memory_space<semaphore_mem>>)
      }
      %c32_i32_43 = arith.constant 32 : i32
    } else {
    }
    %c1_i32_1 = arith.constant 1 : i32
    %4 = arith.addi %arg0, %c1_i32_1 : i32
    %c2_i32 = arith.constant 2 : i32
    %5 = arith.cmpi slt, %4, %c2_i32 : i32
    %6 = arith.extui %5 : i1 to i32
    %c0_i32_2 = arith.constant 0 : i32
    %7 = arith.cmpi ne, %6, %c0_i32_2 : i32
    scf.if %7 {
      %c1_i32_37 = arith.constant 1 : i32
      %57 = arith.addi %arg0, %c1_i32_37 : i32
      %c1_i32_38 = arith.constant 1 : i32
      %58 = arith.subi %c1_i32_38, %0 : i32
      %c32_i32_39 = arith.constant 32 : i32
      %59 = arith.muli %57, %c32_i32_39 : i32
      %c0_i32_40 = arith.constant 0 : i32
      %c32_i32_41 = arith.constant 32 : i32
      %60 = arith.addi %c0_i32_40, %c32_i32_41 : i32
      %c1_i32_42 = arith.constant 1 : i32
      scf.for %arg10 = %c0_i32_40 to %60 step %c1_i32_42  : i32 {
        %c1_i32_44 = arith.constant 1 : i32
        %61 = arith.muli %arg10, %c1_i32_44 : i32
        %c0_i32_45 = arith.constant 0 : i32
        %62 = arith.addi %c0_i32_45, %61 : i32
        %63 = arith.addi %59, %62 : i32
        %64 = arith.index_cast %63 : i32 to index
        %65 = memref.load %arg1[%64] : memref<64xi32, #tpu.memory_space<smem>>
        %c0_i32_46 = arith.constant 0 : i32
        %66 = tpu.memref_slice %arg2[%65, %c0_i32_46] : memref<20x128xf32, #tpu.memory_space<any>> -> memref<1x128xf32, #tpu.memory_space<any>>
        %67 = tpu.memref_squeeze %66 : memref<1x128xf32, #tpu.memory_space<any>> -> memref<128xf32, #tpu.memory_space<any>>
        %c0_i32_47 = arith.constant 0 : i32
        %68 = tpu.memref_slice %arg8[%58, %62, %c0_i32_47] : memref<2x32x128xf32, #tpu.memory_space<vmem>> -> memref<1x1x128xf32, #tpu.memory_space<vmem>>
        %69 = tpu.memref_squeeze %68 : memref<1x1x128xf32, #tpu.memory_space<vmem>> -> memref<128xf32, #tpu.memory_space<vmem>>
        %70 = tpu.memref_slice %arg9[%58] : memref<2x!tpu.dma_semaphore, #tpu.memory_space<semaphore_mem>> -> memref<1x!tpu.dma_semaphore, #tpu.memory_space<semaphore_mem>>
        %71 = tpu.memref_squeeze %70 : memref<1x!tpu.dma_semaphore, #tpu.memory_space<semaphore_mem>> -> memref<!tpu.dma_semaphore, #tpu.memory_space<semaphore_mem>>
        tpu.enqueue_dma source(%67 : memref<128xf32, #tpu.memory_space<any>>) target(%69 : memref<128xf32, #tpu.memory_space<vmem>>) target_semaphore(%71 : memref<!tpu.dma_semaphore, #tpu.memory_space<semaphore_mem>>)
      }
      %c32_i32_43 = arith.constant 32 : i32
    } else {
    }
    %c0_i32_3 = arith.constant 0 : i32
    %c32_i32 = arith.constant 32 : i32
    %8 = arith.addi %c0_i32_3, %c32_i32 : i32
    %c1_i32_4 = arith.constant 1 : i32
    scf.for %arg10 = %c0_i32_3 to %8 step %c1_i32_4  : i32 {
      %c1_i32_37 = arith.constant 1 : i32
      %57 = arith.muli %arg10, %c1_i32_37 : i32
      %c0_i32_38 = arith.constant 0 : i32
      %58 = arith.addi %c0_i32_38, %57 : i32
      %c0_i32_39 = arith.constant 0 : i32
      %c0_i32_40 = arith.constant 0 : i32
      %59 = tpu.memref_slice %arg2[%c0_i32_39, %c0_i32_40] : memref<20x128xf32, #tpu.memory_space<any>> -> memref<1x128xf32, #tpu.memory_space<any>>
      %60 = tpu.memref_squeeze %59 : memref<1x128xf32, #tpu.memory_space<any>> -> memref<128xf32, #tpu.memory_space<any>>
      %c0_i32_41 = arith.constant 0 : i32
      %61 = tpu.memref_slice %arg8[%0, %58, %c0_i32_41] : memref<2x32x128xf32, #tpu.memory_space<vmem>> -> memref<1x1x128xf32, #tpu.memory_space<vmem>>
      %62 = tpu.memref_squeeze %61 : memref<1x1x128xf32, #tpu.memory_space<vmem>> -> memref<128xf32, #tpu.memory_space<vmem>>
      %63 = tpu.memref_slice %arg9[%0] : memref<2x!tpu.dma_semaphore, #tpu.memory_space<semaphore_mem>> -> memref<1x!tpu.dma_semaphore, #tpu.memory_space<semaphore_mem>>
      %64 = tpu.memref_squeeze %63 : memref<1x!tpu.dma_semaphore, #tpu.memory_space<semaphore_mem>> -> memref<!tpu.dma_semaphore, #tpu.memory_space<semaphore_mem>>
      tpu.wait_dma2 semaphore(%64 : memref<!tpu.dma_semaphore, #tpu.memory_space<semaphore_mem>>) src(%60 : memref<128xf32, #tpu.memory_space<any>>) dst(%62 : memref<128xf32, #tpu.memory_space<vmem>>)
    }
    %c32_i32_5 = arith.constant 32 : i32
    %9 = arith.index_cast %0 : i32 to index
    %c0 = arith.constant 0 : index
    %c0_6 = arith.constant 0 : index
    %10 = vector.load %arg8[%9, %c0, %c0_6] : memref<2x32x128xf32, #tpu.memory_space<vmem>>, vector<1x32x128xf32>
    %11 = vector.shape_cast %10 : vector<1x32x128xf32> to vector<32x128xf32>
    %c0_7 = arith.constant 0 : index
    %c0_8 = arith.constant 0 : index
    %12 = vector.load %arg3[%c0_7, %c0_8] : memref<128x128xf32, #tpu.memory_space<vmem>>, vector<128x128xf32>
    %cst = arith.constant dense<0.000000e+00> : vector<32x128xf32>
    %13 = tpu.matmul %11, %12, %cst {dimension_numbers = #tpu.dot_dimension_numbers<[1], [0], [0], [1], [0, 0, 1, 1], [], []>} : vector<32x128xf32>, vector<128x128xf32>, vector<32x128xf32> -> vector<32x128xf32>
    %c0_9 = arith.constant 0 : index
    %c0_10 = arith.constant 0 : index
    %14 = vector.load %arg5[%c0_9, %c0_10] : memref<1x128xf32, #tpu.memory_space<vmem>>, vector<1x128xf32>
    %15 = vector.broadcast %14 : vector<1x128xf32> to vector<32x128xf32>
    %16 = arith.addf %13, %15 : vector<32x128xf32>
    %c0_11 = arith.constant 0 : index
    %c0_12 = arith.constant 0 : index
    %17 = vector.load %arg6[%c0_11, %c0_12] : memref<32x128xf32, #tpu.memory_space<vmem>>, vector<32x128xf32>
    tpu.vector_store %arg6[%c0_11, %c0_12], %16 {strides = array<i32>} : memref<32x128xf32, #tpu.memory_space<vmem>>, vector<32x128xf32>,
    %c0_13 = arith.constant 0 : index
    %c0_14 = arith.constant 0 : index
    %18 = vector.load %arg4[%c0_13, %c0_14] : memref<128x128xf32, #tpu.memory_space<vmem>>, vector<128x128xf32>
    %c0_15 = arith.constant 0 : index
    %c0_16 = arith.constant 0 : index
    %19 = vector.load %arg7[%c0_15, %c0_16] : memref<8x128xf32, #tpu.memory_space<vmem>>, vector<8x128xf32>
    %c0_i32_17 = arith.constant 0 : i32
    %c8_i32 = arith.constant 8 : i32
    %20 = arith.muli %c0_i32_17, %c8_i32 : i32
    %21 = tpu.assume_multiple %20, 8 : i32
    %22 = arith.index_cast %21 : i32 to index
    %c0_18 = arith.constant 0 : index
    %23 = vector.load %arg6[%22, %c0_18] : memref<32x128xf32, #tpu.memory_space<vmem>>, vector<8x128xf32>
    %cst_19 = arith.constant dense<0.000000e+00> : vector<8x128xf32>
    %24 = tpu.matmul %19, %18, %cst_19 {dimension_numbers = #tpu.dot_dimension_numbers<[1], [0], [0], [1], [0, 0, 1, 1], [], []>} : vector<8x128xf32>, vector<128x128xf32>, vector<8x128xf32> -> vector<8x128xf32>
    %25 = arith.addf %23, %24 : vector<8x128xf32>
    %26 = math.tanh %25 : vector<8x128xf32>
    %27 = arith.index_cast %21 : i32 to index
    %c0_20 = arith.constant 0 : index
    %28 = vector.load %arg6[%27, %c0_20] : memref<32x128xf32, #tpu.memory_space<vmem>>, vector<8x128xf32>
    tpu.vector_store %arg6[%27, %c0_20], %26 {strides = array<i32>} : memref<32x128xf32, #tpu.memory_space<vmem>>, vector<8x128xf32>,
    %c1_i32_21 = arith.constant 1 : i32
    %c8_i32_22 = arith.constant 8 : i32
    %29 = arith.muli %c1_i32_21, %c8_i32_22 : i32
    %30 = tpu.assume_multiple %29, 8 : i32
    %31 = arith.index_cast %30 : i32 to index
    %c0_23 = arith.constant 0 : index
    %32 = vector.load %arg6[%31, %c0_23] : memref<32x128xf32, #tpu.memory_space<vmem>>, vector<8x128xf32>
    %cst_24 = arith.constant dense<0.000000e+00> : vector<8x128xf32>
    %33 = tpu.matmul %26, %18, %cst_24 {dimension_numbers = #tpu.dot_dimension_numbers<[1], [0], [0], [1], [0, 0, 1, 1], [], []>} : vector<8x128xf32>, vector<128x128xf32>, vector<8x128xf32> -> vector<8x128xf32>
    %34 = arith.addf %32, %33 : vector<8x128xf32>
    %35 = math.tanh %34 : vector<8x128xf32>
    %36 = arith.index_cast %30 : i32 to index
    %c0_25 = arith.constant 0 : index
    %37 = vector.load %arg6[%36, %c0_25] : memref<32x128xf32, #tpu.memory_space<vmem>>, vector<8x128xf32>
    tpu.vector_store %arg6[%36, %c0_25], %35 {strides = array<i32>} : memref<32x128xf32, #tpu.memory_space<vmem>>, vector<8x128xf32>,
    %c2_i32_26 = arith.constant 2 : i32
    %c8_i32_27 = arith.constant 8 : i32
    %38 = arith.muli %c2_i32_26, %c8_i32_27 : i32
    %39 = tpu.assume_multiple %38, 8 : i32
    %40 = arith.index_cast %39 : i32 to index
    %c0_28 = arith.constant 0 : index
    %41 = vector.load %arg6[%40, %c0_28] : memref<32x128xf32, #tpu.memory_space<vmem>>, vector<8x128xf32>
    %cst_29 = arith.constant dense<0.000000e+00> : vector<8x128xf32>
    %42 = tpu.matmul %35, %18, %cst_29 {dimension_numbers = #tpu.dot_dimension_numbers<[1], [0], [0], [1], [0, 0, 1, 1], [], []>} : vector<8x128xf32>, vector<128x128xf32>, vector<8x128xf32> -> vector<8x128xf32>
    %43 = arith.addf %41, %42 : vector<8x128xf32>
    %44 = math.tanh %43 : vector<8x128xf32>
    %45 = arith.index_cast %39 : i32 to index
    %c0_30 = arith.constant 0 : index
    %46 = vector.load %arg6[%45, %c0_30] : memref<32x128xf32, #tpu.memory_space<vmem>>, vector<8x128xf32>
    tpu.vector_store %arg6[%45, %c0_30], %44 {strides = array<i32>} : memref<32x128xf32, #tpu.memory_space<vmem>>, vector<8x128xf32>,
    %c3_i32 = arith.constant 3 : i32
    %c8_i32_31 = arith.constant 8 : i32
    %47 = arith.muli %c3_i32, %c8_i32_31 : i32
    %48 = tpu.assume_multiple %47, 8 : i32
    %49 = arith.index_cast %48 : i32 to index
    %c0_32 = arith.constant 0 : index
    %50 = vector.load %arg6[%49, %c0_32] : memref<32x128xf32, #tpu.memory_space<vmem>>, vector<8x128xf32>
    %cst_33 = arith.constant dense<0.000000e+00> : vector<8x128xf32>
    %51 = tpu.matmul %44, %18, %cst_33 {dimension_numbers = #tpu.dot_dimension_numbers<[1], [0], [0], [1], [0, 0, 1, 1], [], []>} : vector<8x128xf32>, vector<128x128xf32>, vector<8x128xf32> -> vector<8x128xf32>
    %52 = arith.addf %50, %51 : vector<8x128xf32>
    %53 = math.tanh %52 : vector<8x128xf32>
    %54 = arith.index_cast %48 : i32 to index
    %c0_34 = arith.constant 0 : index
    %55 = vector.load %arg6[%54, %c0_34] : memref<32x128xf32, #tpu.memory_space<vmem>>, vector<8x128xf32>
    tpu.vector_store %arg6[%54, %c0_34], %53 {strides = array<i32>} : memref<32x128xf32, #tpu.memory_space<vmem>>, vector<8x128xf32>,
    %c4_i32 = arith.constant 4 : i32
    %c0_35 = arith.constant 0 : index
    %c0_36 = arith.constant 0 : index
    %56 = vector.load %arg7[%c0_35, %c0_36] : memref<8x128xf32, #tpu.memory_space<vmem>>, vector<8x128xf32>
    tpu.vector_store %arg7[%c0_35, %c0_36], %53 {strides = array<i32>} : memref<8x128xf32, #tpu.memory_space<vmem>>, vector<8x128xf32>,
    return
  }
  func.func @transform_1(%arg0: i32, %arg1: memref<64xi32, #tpu.memory_space<smem>>) -> (i32, i32) {
    %c0_i32 = arith.constant 0 : i32
    %c0_i32_0 = arith.constant 0 : i32
    %c0_i32_1 = arith.constant 0 : i32
    return %c0_i32, %c0_i32_0 : i32, i32
  }
  func.func @transform_2(%arg0: i32, %arg1: memref<64xi32, #tpu.memory_space<smem>>) -> (i32, i32) {
    %c0_i32 = arith.constant 0 : i32
    %c0_i32_0 = arith.constant 0 : i32
    %c0_i32_1 = arith.constant 0 : i32
    return %c0_i32, %c0_i32_0 : i32, i32
  }
  func.func @transform_3(%arg0: i32, %arg1: memref<64xi32, #tpu.memory_space<smem>>) -> (i32, i32) {
    %c0_i32 = arith.constant 0 : i32
    %c0_i32_0 = arith.constant 0 : i32
    %c0_i32_1 = arith.constant 0 : i32
    return %c0_i32, %c0_i32_0 : i32, i32
  }
  func.func @transform_4(%arg0: i32, %arg1: memref<64xi32, #tpu.memory_space<smem>>) -> (i32, i32) {
    %c0_i32 = arith.constant 0 : i32
    %c0_i32_0 = arith.constant 0 : i32
    return %arg0, %c0_i32 : i32, i32
  }
  func.func @transform_5(%arg0: i32, %arg1: memref<64xi32, #tpu.memory_space<smem>>) -> (i32, i32) {
    %c0_i32 = arith.constant 0 : i32
    %c0_i32_0 = arith.constant 0 : i32
    %c0_i32_1 = arith.constant 0 : i32
    return %c0_i32, %c0_i32_0 : i32, i32
  }
}

</mosaic_0001>

<llo_original>
// kernel: tpu_custom_call.1
$region0: #{tpu_custom_call.1}
  #allocation0 [shape = 'u32[]', space=smem, size = 0x4, offset = 0x4, fixed_abs, tag = 'smem constant byte address 0x4 - core index']
  #allocation1 [shape = 'u32[72,128]{1,0:T(1,128)}', space=vmem, size = 0x9000, scoped, tag = 'internal scratch']
  #allocation2 [shape = 'f32[2,32,128]{2,1,0:T(8,128)}', space=vmem, size = 0x8000, scoped, tag = 'scratch operand']
  #allocation3 [shape = 's32[2]{0}', space=sflag, size = 0x8, scoped, tag = 'scratch operand']
  #allocation4 [shape = 's32[1]{0}', space=sflag, size = 0x4, scoped, tag = 'scoped memory for tpu_custom_call.1']
  #allocation5 [shape = 'u8[512]{0}', space=smem, size = 0x200, scoped, tag = 'prefetched SMEM operand 0']
  #allocation14 [shape = 's32[]', space=sflag, size = 0x4, offset = 0, fixed_abs, tag = 'sflag constant byte address 0x0 - dummy sync flag']
  #allocation15 [shape = 's32[]', space=sflag, size = 0x4, offset = 0, fixed_abs, tag = 'sflag constant byte address 0x0 - dummy sync flag']
  #allocation16 [shape = 'u32[]', space=smem, size = 0x4, offset = 0x44, fixed_abs, tag = 'smem constant byte address 0x44 - assertion arg 0']
  #allocation17 [shape = 'u32[]', space=smem, size = 0x4, offset = 0x48, fixed_abs, tag = 'smem constant byte address 0x48 - assertion arg 1']
  #allocation18 [shape = 's32[]', space=sflag, size = 0x4, offset = 0, fixed_abs, tag = 'sflag constant byte address 0x0 - dummy sync flag']
  #allocation19 [shape = 's32[]', space=sflag, size = 0x4, offset = 0, fixed_abs, tag = 'sflag constant byte address 0x0 - dummy sync flag']
  %s0 = inlined_call_operand.hbm [shape: s32[64], index: 0, kind: input, shape index: {}]
  %s1 = inlined_call_operand.hbm [shape: f32[20,128], index: 1, kind: input, shape index: {}]
  %s2 = inlined_call_operand.hbm [shape: f32[128,128], index: 2, kind: input, shape index: {}]
  %s3 = inlined_call_operand.hbm [shape: f32[128,128], index: 3, kind: input, shape index: {}]
  %s4 = inlined_call_operand.vmem [shape: f32[1,128], index: 4, kind: input, shape index: {}]
  %s5 = inlined_call_operand.hbm [shape: f32[64,128], index: 5, kind: output, shape index: {0}]
  %s6 = inlined_call_operand.hbm [shape: f32[8,128], index: 6, kind: output, shape index: {1}]
  %7 = xla_tuple %s5, %s6
  %s8 = sld [smem:[#allocation0]]
  $region98: #{tpu_custom_call.1} parent=0
    _
  %s10 = ssub.s32 1, %s8
  %s11 = scalar_select 0, %s10, %s8
  %s13 = sshll.u32 %s0, 4
  %s14 = int_to_ptr.hbm [resolvable:$true] %s13
  %16 = dma.hbm_to_smem %s14, 16, [#allocation5], [#allocation4]
  %18 = dma.done [#allocation4], 16
  %19 = sfence
  $region1: #{tpu_custom_call.1} parent=0
    #allocation6 [shape = 'u8[65536]{0}', space=vmem, size = 0x10000, scoped, tag = 'input window, operand 2, single buffered']
    #allocation7 [shape = 's32[2]{0}', space=sflag, size = 0x8, scoped, tag = 'scoped memory for tpu_custom_call.1']
    #allocation8 [shape = 's32[2]{0}', space=sflag, size = 0x8, scoped, tag = 'scoped memory for tpu_custom_call.1']
    #allocation9 [shape = 'u8[65536]{0}', space=vmem, size = 0x10000, scoped, tag = 'input window, operand 3, single buffered']
    #allocation10 [shape = 's32[1]{0}', space=sflag, size = 0x4, scoped, tag = 'scoped memory for tpu_custom_call.1']
    #allocation11 [shape = 'u8[32768]{0}', space=vmem, size = 0x8000, scoped, tag = 'output window, operand 0']
    #allocation12 [shape = 'u8[4096]{0}', space=vmem, size = 0x1000, scoped, tag = 'output window, operand 1, single buffered']
    #allocation13 [shape = 's32[1]{0}', space=sflag, size = 0x4, scoped, tag = 'scoped memory for tpu_custom_call.1']
    %20 = vsyncpa [#allocation7], 0
    %21 = vsyncpa [#allocation10], 0
    %22 = vsyncpa [#allocation8], 0
    %s23 = scalar_lea.sflag [#allocation8], 1
    %24 = vsyncpa %s23, 0
    %25 = vsyncpa [#allocation13], 0
    loop: start=0, step=1, limit=4
    $region2: #{tpu_custom_call.1} parent=1 // loop_pre_header
      _
    $region3: #{tpu_custom_call.1} parent=1 // loop_header
      %s27 = sphi 0, %s31
      %p28 = scmp.ge.s32.totalorder %s27, 4
      %s35 = sphi 0, %s35
      %s37 = sphi 0, %s35
      %s38 = sphi 0, %s37
      %s52 = sphi 0, %s38
      %s56 = sphi 0, %s56
      %s58 = sphi 0, %s56
      %s59 = sphi 0, %s58
      %s73 = sphi 0, %s59
      %s77 = sphi 0, %s77
      %s79 = sphi 0, %s77
      %s80 = sphi 0, %s79
      %s94 = sphi 0, %s80
      %s100 = sphi 0, %s102
      %s103 = sphi 0, %s100
      %s104 = sphi 0, %s103
      %s120 = sphi 0, %s104
      %s124 = sphi 0, %s124
      %s126 = sphi 0, %s124
      %s127 = sphi 0, %s126
      %s141 = sphi 0, %s127
    $region4: #{tpu_custom_call.1} parent=1 // loop_header_branch
      %30 = sbr.rel (%p28) target = $region8
    $region5: #{tpu_custom_call.1} parent=1 // loop_body
      %s32 = ssub.s32 %s27, 1
      %s33 = ssub.s32 %s27, 2
      %s34 = sadd.s32 %s27, 1
      %s36 = sadd.s32 %s35, 1
      %p39 = scmp.eq.s32.totalorder %s27, 1
      %p40 = scmp.ne.s32.totalorder %s35, %s37
      %p41 = scmp.eq.s32.totalorder %s27, 0
      %p42 = por %p40, %p41
      %p43 = scmp.ne.s32.totalorder %s35, %s37
      %p44 = scmp.eq.s32.totalorder %s32, 1
      %p45 = por %p43, %p44
      %p46 = scmp.ne.s32.totalorder %s37, %s38
      %p47 = scmp.eq.s32.totalorder %s32, 0
      %p48 = por %p46, %p47
      %p49 = scmp.ne.s32.totalorder %s37, %s38
      %p50 = scmp.eq.s32.totalorder %s33, 1
      %p51 = por %p49, %p50
      %p53 = scmp.ne.s32.totalorder %s38, %s52
      %p54 = scmp.eq.s32.totalorder %s33, 0
      %p55 = por %p53, %p54
      %s57 = sadd.s32 %s56, 1
      %p60 = scmp.eq.s32.totalorder %s27, 1
      %p61 = scmp.ne.s32.totalorder %s56, %s58
      %p62 = scmp.eq.s32.totalorder %s27, 0
      %p63 = por %p61, %p62
      %p64 = scmp.ne.s32.totalorder %s56, %s58
      %p65 = scmp.eq.s32.totalorder %s32, 1
      %p66 = por %p64, %p65
      %p67 = scmp.ne.s32.totalorder %s58, %s59
      %p68 = scmp.eq.s32.totalorder %s32, 0
      %p69 = por %p67, %p68
      %p70 = scmp.ne.s32.totalorder %s58, %s59
      %p71 = scmp.eq.s32.totalorder %s33, 1
      %p72 = por %p70, %p71
      %p74 = scmp.ne.s32.totalorder %s59, %s73
      %p75 = scmp.eq.s32.totalorder %s33, 0
      %p76 = por %p74, %p75
      %s78 = sadd.s32 %s77, 1
      %p81 = scmp.eq.s32.totalorder %s27, 1
      %p82 = scmp.ne.s32.totalorder %s77, %s79
      %p83 = scmp.eq.s32.totalorder %s27, 0
      %p84 = por %p82, %p83
      %p85 = scmp.ne.s32.totalorder %s77, %s79
      %p86 = scmp.eq.s32.totalorder %s32, 1
      %p87 = por %p85, %p86
      %p88 = scmp.ne.s32.totalorder %s79, %s80
      %p89 = scmp.eq.s32.totalorder %s32, 0
      %p90 = por %p88, %p89
      %p91 = scmp.ne.s32.totalorder %s79, %s80
      %p92 = scmp.eq.s32.totalorder %s33, 1
      %p93 = por %p91, %p92
      %p95 = scmp.ne.s32.totalorder %s80, %s94
      %p96 = scmp.eq.s32.totalorder %s33, 0
      %p97 = por %p95, %p96
      %s98 = ssub.s32 %s27, %s34
      %p99 = scmp.eq.s32.totalorder %s98, 0
      %s101 = sadd.s32 %s100, 1
      %s102 = scalar_select %p99, %s100, %s101
      %p105 = pneg %p99
      %p106 = scmp.eq.s32.totalorder %s27, 1
      %p107 = por %p105, %p106
      %p108 = scmp.ne.s32.totalorder %s100, %s103
      %p109 = scmp.eq.s32.totalorder %s27, 0
      %p110 = por %p108, %p109
      %p111 = scmp.ne.s32.totalorder %s100, %s103
      %p112 = scmp.eq.s32.totalorder %s32, 1
      %p113 = por %p111, %p112
      %p114 = scmp.ne.s32.totalorder %s103, %s104
      %p115 = scmp.eq.s32.totalorder %s32, 0
      %p116 = por %p114, %p115
      %p117 = scmp.ne.s32.totalorder %s103, %s104
      %p118 = scmp.eq.s32.totalorder %s33, 1
      %p119 = por %p117, %p118
      %p121 = scmp.ne.s32.totalorder %s104, %s120
      %p122 = scmp.eq.s32.totalorder %s33, 0
      %p123 = por %p121, %p122
      %s125 = sadd.s32 %s124, 1
      %p128 = scmp.eq.s32.totalorder %s27, 1
      %p129 = scmp.ne.s32.totalorder %s124, %s126
      %p130 = scmp.eq.s32.totalorder %s27, 0
      %p131 = por %p129, %p130
      %p132 = scmp.ne.s32.totalorder %s124, %s126
      %p133 = scmp.eq.s32.totalorder %s32, 1
      %p134 = por %p132, %p133
      %p135 = scmp.ne.s32.totalorder %s126, %s127
      %p136 = scmp.eq.s32.totalorder %s32, 0
      %p137 = por %p135, %p136
      %p138 = scmp.ne.s32.totalorder %s126, %s127
      %p139 = scmp.eq.s32.totalorder %s33, 1
      %p140 = por %p138, %p139
      %p142 = scmp.ne.s32.totalorder %s127, %s141
      %p143 = scmp.eq.s32.totalorder %s33, 0
      %p144 = por %p142, %p143
      %p145 = scmp.le.s32.totalorder 1, %s27
      %p146 = scmp.lt.s32.totalorder %s27, 3
      %p147 = pnand %p145, %p146
      %p148 = pneg %p147
      // Predicated region
      $region9: #{tpu_custom_call.1} parent=5 // pred_check
        _
      $region10: #{tpu_custom_call.1} parent=5 // pred_check_branch
        %150 = sbr.rel (%p147) target = $region12
      $region11: #{tpu_custom_call.1} parent=5 // pred_region
        %s151 = ssub.s32 %s27, 1
        // Predicated region
        $region13: #{tpu_custom_call.1} parent=11 // pred_check
          %p152 = pneg %p48
        $region14: #{tpu_custom_call.1} parent=11 // pred_check_branch
          %154 = sbr.rel (%p152) target = $region16
        $region15: #{tpu_custom_call.1} parent=11 // pred_region
          %156 = vsyncadd [#allocation7], 0
          %s157 = sshll.u32 %s2, 4
          %s158 = int_to_ptr.hbm [resolvable:$true] %s157
          %s159 = sshll.u32 [#allocation6], 4
          %s160 = int_to_ptr.vmem [resolvable:$true] %s159
          %165 = dma.hbm_to_vmem [thread:$0]  %s158, 2048, %s160, [#allocation7], 128, 128, 8
        $region16: #{tpu_custom_call.1} parent=11 // pred_fallthru
          _
        // Predicated region
        $region17: #{tpu_custom_call.1} parent=11 // pred_check
          %p166 = pneg %p69
        $region18: #{tpu_custom_call.1} parent=11 // pred_check_branch
          %168 = sbr.rel (%p166) target = $region20
        $region19: #{tpu_custom_call.1} parent=11 // pred_region
          %170 = vsyncadd [#allocation10], 0
          %s171 = sshll.u32 %s3, 4
          %s172 = int_to_ptr.hbm [resolvable:$true] %s171
          %s173 = sshll.u32 [#allocation9], 4
          %s174 = int_to_ptr.vmem [resolvable:$true] %s173
          %179 = dma.hbm_to_vmem [thread:$0]  %s172, 2048, %s174, [#allocation10], 128, 128, 8
        $region20: #{tpu_custom_call.1} parent=11 // pred_fallthru
          _
        // Predicated region
        $region21: #{tpu_custom_call.1} parent=11 // pred_check
          %p180 = pneg %p90
        $region22: #{tpu_custom_call.1} parent=11 // pred_check_branch
          %182 = sbr.rel (%p180) target = $region24
        $region23: #{tpu_custom_call.1} parent=11 // pred_region
          _
        $region24: #{tpu_custom_call.1} parent=11 // pred_fallthru
          _
      $region12: #{tpu_custom_call.1} parent=5 // pred_fallthru
        _
      %p183 = scmp.lt.s32.totalorder %s27, 2
      // Predicated region
      $region25: #{tpu_custom_call.1} parent=5 // pred_check
        %p184 = pneg %p183
      $region26: #{tpu_custom_call.1} parent=5 // pred_check_branch
        %186 = sbr.rel (%p184) target = $region28
      $region27: #{tpu_custom_call.1} parent=5 // pred_region
        _
      $region28: #{tpu_custom_call.1} parent=5 // pred_fallthru
        _
      %p187 = scmp.le.s32.totalorder 1, %s27
      %p188 = scmp.lt.s32.totalorder %s27, 3
      %p189 = pnand %p187, %p188
      %p190 = pneg %p189
      // Predicated region
      $region29: #{tpu_custom_call.1} parent=5 // pred_check
        _
      $region30: #{tpu_custom_call.1} parent=5 // pred_check_branch
        %192 = sbr.rel (%p189) target = $region32
      $region31: #{tpu_custom_call.1} parent=5 // pred_region
        %s193 = ssub.s32 %s27, 1
        // Predicated region
        $region33: #{tpu_custom_call.1} parent=31 // pred_check
          %p194 = pneg %p48
        $region34: #{tpu_custom_call.1} parent=31 // pred_check_branch
          %196 = sbr.rel (%p194) target = $region36
        $region35: #{tpu_custom_call.1} parent=31 // pred_region
          %198 = dma.done [#allocation7], 2048
        $region36: #{tpu_custom_call.1} parent=31 // pred_fallthru
          _
        // Predicated region
        $region37: #{tpu_custom_call.1} parent=31 // pred_check
          %p199 = pneg %p69
        $region38: #{tpu_custom_call.1} parent=31 // pred_check_branch
          %201 = sbr.rel (%p199) target = $region40
        $region39: #{tpu_custom_call.1} parent=31 // pred_region
          %203 = dma.done [#allocation10], 2048
        $region40: #{tpu_custom_call.1} parent=31 // pred_fallthru
          _
        %p204 = pneg %p48
        %p205 = pneg %p45
        %p206 = pneg %p69
        %p207 = pneg %p66
        %p208 = pneg %p90
        %p209 = pneg %p87
        %p210 = pneg %p116
        %p211 = pneg %p113
        %s212 = sand.u32 %s103, 1
        %s213 = scalar_lea.sflag [#allocation8], %s212
        %s214 = sand.u32 %s103, 1
        %s215 = smul.addr %s214, 32
        %s216 = scalar_lea.vmem [#allocation11], %s215
        %p217 = pneg %p137
        %p218 = pneg %p134
        %s219 = smul.u32 4, %s32
        %s220 = sand.u32 %s32, 1
        %p221 = scmp.eq.s32.totalorder %s32, 0
        // Predicated region
        $region41: #{tpu_custom_call.1} parent=31 // pred_check
          %p222 = pneg %p221
        $region42: #{tpu_custom_call.1} parent=31 // pred_check_branch
          %224 = sbr.rel (%p222) target = $region44
        $region43: #{tpu_custom_call.1} parent=31 // pred_region
          %225 = vst [vmem:[#allocation12] sm:$0xff] 0.0
          loop: start=0, step=1, limit=32
          $region45: #{tpu_custom_call.1} parent=43 // loop_pre_header
            _
          $region46: #{tpu_custom_call.1} parent=43 // loop_header
            %s227 = sphi 0, %s231
            %p228 = scmp.ge.s32.totalorder %s227, 32
          $region47: #{tpu_custom_call.1} parent=43 // loop_header_branch
            %230 = sbr.rel (%p228) target = $region51
          $region48: #{tpu_custom_call.1} parent=43 // loop_body
            %s232 = sld [smem:[#allocation5 + %s227]]
            %s233 = scalar_lea.hbm %s1, %s232
            %s234 = scalar_lea.vmem [#allocation2], %s227
            // Predicated region
            $region52: #{tpu_custom_call.1} parent=48 // pred_check
              _
            $region53: #{tpu_custom_call.1} parent=48 // pred_check_branch
              %236 = sbr.rel target = $region55
            $region54: #{tpu_custom_call.1} parent=48 // pred_region
              %237 = sst [smem:[#allocation16]] [#allocation15]
              %238 = sst [smem:[#allocation17]] [#allocation14]
            $region55: #{tpu_custom_call.1} parent=48 // pred_fallthru
              _
            %240 = shalt.err (0)
            %s242 = sshll.u32 %s233, 4
            %s243 = int_to_ptr.hbm [resolvable:$true] %s242
            %s244 = sshll.u32 %s234, 4
            %s245 = int_to_ptr.vmem [resolvable:$true] %s244
            %247 = dma.hbm_to_vmem [thread:$0]  %s243, 16, %s245, [#allocation3]
          $region49: #{tpu_custom_call.1} parent=43 // loop_footer
            %s231 = sadd.s32 1, %s227
          $region50: #{tpu_custom_call.1} parent=43 // loop_footer_branch
            %226 = sbr.rel target = $region46
          $region51: #{tpu_custom_call.1} parent=43 // loop_exit
            _
        $region44: #{tpu_custom_call.1} parent=31 // pred_fallthru
          _
        %s248 = sadd.s32 %s32, 1
        %p249 = scmp.lt.s32.totalorder %s248, 2
        // Predicated region
        $region56: #{tpu_custom_call.1} parent=31 // pred_check
          %p250 = pneg %p249
        $region57: #{tpu_custom_call.1} parent=31 // pred_check_branch
          %252 = sbr.rel (%p250) target = $region59
        $region58: #{tpu_custom_call.1} parent=31 // pred_region
          %s253 = ssub.s32 1, %s220
          %s254 = smul.u32 %s248, 32
          loop: start=0, step=1, limit=32
          $region60: #{tpu_custom_call.1} parent=58 // loop_pre_header
            _
          $region61: #{tpu_custom_call.1} parent=58 // loop_header
            %s256 = sphi 0, %s260
            %p257 = scmp.ge.s32.totalorder %s256, 32
          $region62: #{tpu_custom_call.1} parent=58 // loop_header_branch
            %259 = sbr.rel (%p257) target = $region66
          $region63: #{tpu_custom_call.1} parent=58 // loop_body
            %s261 = sadd.s32 %s254, %s256
            %s262 = sld [smem:[#allocation5 + %s261]]
            %s263 = scalar_lea.hbm %s1, %s262
            %s264 = smul.u32 %s253, 32
            %s265 = sadd.s32 %s256, %s264
            %s266 = scalar_lea.vmem [#allocation2], %s265
            %s267 = scalar_lea.sflag [#allocation3], %s253
            // Predicated region
            $region67: #{tpu_custom_call.1} parent=63 // pred_check
              _
            $region68: #{tpu_custom_call.1} parent=63 // pred_check_branch
              %269 = sbr.rel target = $region70
            $region69: #{tpu_custom_call.1} parent=63 // pred_region
              %270 = sst [smem:[#allocation16]] [#allocation19]
              %271 = sst [smem:[#allocation17]] [#allocation18]
            $region70: #{tpu_custom_call.1} parent=63 // pred_fallthru
              _
            %273 = shalt.err (0)
            %s275 = sshll.u32 %s263, 4
            %s276 = int_to_ptr.hbm [resolvable:$true] %s275
            %s277 = sshll.u32 %s266, 4
            %s278 = int_to_ptr.vmem [resolvable:$true] %s277
            %280 = dma.hbm_to_vmem [thread:$0]  %s276, 16, %s278, %s267
          $region64: #{tpu_custom_call.1} parent=58 // loop_footer
            %s260 = sadd.s32 1, %s256
          $region65: #{tpu_custom_call.1} parent=58 // loop_footer_branch
            %255 = sbr.rel target = $region61
          $region66: #{tpu_custom_call.1} parent=58 // loop_exit
            _
        $region59: #{tpu_custom_call.1} parent=31 // pred_fallthru
          _
        loop: start=0, step=1, limit=32
        $region71: #{tpu_custom_call.1} parent=31 // loop_pre_header
          _
        $region72: #{tpu_custom_call.1} parent=31 // loop_header
          %s282 = sphi 0, %s286
          %p283 = scmp.ge.s32.totalorder %s282, 32
        $region73: #{tpu_custom_call.1} parent=31 // loop_header_branch
          %285 = sbr.rel (%p283) target = $region77
        $region74: #{tpu_custom_call.1} parent=31 // loop_body
          %s287 = scalar_lea.sflag [#allocation3], %s220
          %289 = dma.done %s287, 16
        $region75: #{tpu_custom_call.1} parent=31 // loop_footer
          %s286 = sadd.s32 1, %s282
        $region76: #{tpu_custom_call.1} parent=31 // loop_footer_branch
          %281 = sbr.rel target = $region72
        $region77: #{tpu_custom_call.1} parent=31 // loop_exit
          _
        %s290 = smul.u32 %s220, 32
        %s291 = scalar_lea.vmem [#allocation2], %s290
        %v292 = vld [vmem:[%s291] sm:$0xff]
        %v293 = vld [vmem:[%s291 + $0x8] sm:$0xff]
        %v294 = vld [vmem:[%s291 + $0x10] sm:$0xff]
        %v295 = vld [vmem:[%s291 + $0x18] sm:$0xff]
        %v296 = vld [vmem:[#allocation6] sm:$0xff]
        %v297 = vld [vmem:[#allocation6 + $0x8] sm:$0xff]
        %v298 = vld [vmem:[#allocation6 + $0x10] sm:$0xff]
        %v299 = vld [vmem:[#allocation6 + $0x18] sm:$0xff]
        %v300 = vld [vmem:[#allocation6 + $0x20] sm:$0xff]
        %v301 = vld [vmem:[#allocation6 + $0x28] sm:$0xff]
        %v302 = vld [vmem:[#allocation6 + $0x30] sm:$0xff]
        %v303 = vld [vmem:[#allocation6 + $0x38] sm:$0xff]
        %v304 = vld [vmem:[#allocation6 + $0x40] sm:$0xff]
        %v305 = vld [vmem:[#allocation6 + $0x48] sm:$0xff]
        %v306 = vld [vmem:[#allocation6 + $0x50] sm:$0xff]
        %v307 = vld [vmem:[#allocation6 + $0x58] sm:$0xff]
        %v308 = vld [vmem:[#allocation6 + $0x60] sm:$0xff]
        %v309 = vld [vmem:[#allocation6 + $0x68] sm:$0xff]
        %v310 = vld [vmem:[#allocation6 + $0x70] sm:$0xff]
        %v311 = vld [vmem:[#allocation6 + $0x78] sm:$0xff]
        %v312 = vld [vmem:[%s4] sm:$0x1]
        %v314 = vperm.slane %v312, 0
        %316 = vmatpush.msra.mxu0 %v311
        %317 = vmatpush.msra.mxu0 %v310
        %318 = vmatpush.msra.mxu0 %v309
        %319 = vmatpush.msra.mxu0 %v308
        %320 = vmatpush.msra.mxu0 %v307
        %321 = vmatpush.msra.mxu0 %v306
        %322 = vmatpush.msra.mxu0 %v305
        %323 = vmatpush.msra.mxu0 %v304
        %324 = vmatpush.msra.mxu0 %v303
        %325 = vmatpush.msra.mxu0 %v302
        %326 = vmatpush.msra.mxu0 %v301
        %327 = vmatpush.msra.mxu0 %v300
        %328 = vmatpush.msra.mxu0 %v299
        %329 = vmatpush.msra.mxu0 %v298
        %330 = vmatpush.msra.mxu0 %v297
        %331 = vmatpush.msra.mxu0 %v296
        %332 = vmatmul.f32.gmra.mxu0 %v292
        %v333 = vpop.f32.mrf.mxu0
        %v334 = vadd.f32 %v314, %v333
        %335 = vmatmul.f32.gmra.mxu0 %v293
        %v336 = vpop.f32.mrf.mxu0
        %v337 = vadd.f32 %v314, %v336
        %338 = vmatmul.f32.gmra.mxu0 %v294
        %v339 = vpop.f32.mrf.mxu0
        %v340 = vadd.f32 %v314, %v339
        %341 = vmatmul.f32.gmra.mxu0 %v295
        %v342 = vpop.f32.mrf.mxu0
        %v343 = vadd.f32 %v314, %v342
        %344 = vdwg.mxu0
        %345 = vst [vmem:[%s216] sm:$0xff] %v334
        %346 = vst [vmem:[%s216 + $0x8] sm:$0xff] %v337
        %347 = vst [vmem:[%s216 + $0x10] sm:$0xff] %v340
        %348 = vst [vmem:[%s216 + $0x18] sm:$0xff] %v343
        %v349 = vld [vmem:[#allocation9] sm:$0xff]
        %v350 = vld [vmem:[#allocation9 + $0x8] sm:$0xff]
        %v351 = vld [vmem:[#allocation9 + $0x10] sm:$0xff]
        %v352 = vld [vmem:[#allocation9 + $0x18] sm:$0xff]
        %v353 = vld [vmem:[#allocation9 + $0x20] sm:$0xff]
        %v354 = vld [vmem:[#allocation9 + $0x28] sm:$0xff]
        %v355 = vld [vmem:[#allocation9 + $0x30] sm:$0xff]
        %v356 = vld [vmem:[#allocation9 + $0x38] sm:$0xff]
        %v357 = vld [vmem:[#allocation9 + $0x40] sm:$0xff]
        %v358 = vld [vmem:[#allocation9 + $0x48] sm:$0xff]
        %v359 = vld [vmem:[#allocation9 + $0x50] sm:$0xff]
        %v360 = vld [vmem:[#allocation9 + $0x58] sm:$0xff]
        %v361 = vld [vmem:[#allocation9 + $0x60] sm:$0xff]
        %v362 = vld [vmem:[#allocation9 + $0x68] sm:$0xff]
        %v363 = vld [vmem:[#allocation9 + $0x70] sm:$0xff]
        %v364 = vld [vmem:[#allocation9 + $0x78] sm:$0xff]
        %v365 = vld [vmem:[#allocation12] sm:$0xff]
        %v366 = vld [vmem:[%s216] sm:$0xff]
        %367 = vmatpush.msra.mxu0 %v364
        %368 = vmatpush.msra.mxu0 %v363
        %369 = vmatpush.msra.mxu0 %v362
        %370 = vmatpush.msra.mxu0 %v361
        %371 = vmatpush.msra.mxu0 %v360
        %372 = vmatpush.msra.mxu0 %v359
        %373 = vmatpush.msra.mxu0 %v358
        %374 = vmatpush.msra.mxu0 %v357
        %375 = vmatpush.msra.mxu0 %v356
        %376 = vmatpush.msra.mxu0 %v355
        %377 = vmatpush.msra.mxu0 %v354
        %378 = vmatpush.msra.mxu0 %v353
        %379 = vmatpush.msra.mxu0 %v352
        %380 = vmatpush.msra.mxu0 %v351
        %381 = vmatpush.msra.mxu0 %v350
        %382 = vmatpush.msra.mxu0 %v349
        %383 = vmatmul.f32.gmra.mxu0 %v365
        %v384 = vpop.f32.mrf.mxu0
        %v385 = vadd.f32 0.0, %v384
        %386 = vdwg.mxu0
        %v387 = vadd.f32 %v366, %v385
        %v388 = vtanh.pop %v387
        %389 = vst [vmem:[%s216] sm:$0xff] %v388
        %s390 = scalar_lea.vmem %s216, 8 [#allocation11]
        %v391 = vld [vmem:[%s390] sm:$0xff]
        %392 = vmatpush.msra.mxu0 %v364
        %393 = vmatpush.msra.mxu0 %v363
        %394 = vmatpush.msra.mxu0 %v362
        %395 = vmatpush.msra.mxu0 %v361
        %396 = vmatpush.msra.mxu0 %v360
        %397 = vmatpush.msra.mxu0 %v359
        %398 = vmatpush.msra.mxu0 %v358
        %399 = vmatpush.msra.mxu0 %v357
        %400 = vmatpush.msra.mxu0 %v356
        %401 = vmatpush.msra.mxu0 %v355
        %402 = vmatpush.msra.mxu0 %v354
        %403 = vmatpush.msra.mxu0 %v353
        %404 = vmatpush.msra.mxu0 %v352
        %405 = vmatpush.msra.mxu0 %v351
        %406 = vmatpush.msra.mxu0 %v350
        %407 = vmatpush.msra.mxu0 %v349
        %408 = vmatmul.f32.gmra.mxu0 %v388
        %v409 = vpop.f32.mrf.mxu0
        %v410 = vadd.f32 0.0, %v409
        %411 = vdwg.mxu0
        %v412 = vadd.f32 %v391, %v410
        %v413 = vtanh.pop %v412
        %414 = vst [vmem:[%s390] sm:$0xff] %v413
        %s415 = scalar_lea.vmem %s216, 16 [#allocation11]
        %v416 = vld [vmem:[%s415] sm:$0xff]
        %417 = vmatpush.msra.mxu0 %v364
        %418 = vmatpush.msra.mxu0 %v363
        %419 = vmatpush.msra.mxu0 %v362
        %420 = vmatpush.msra.mxu0 %v361
        %421 = vmatpush.msra.mxu0 %v360
        %422 = vmatpush.msra.mxu0 %v359
        %423 = vmatpush.msra.mxu0 %v358
        %424 = vmatpush.msra.mxu0 %v357
        %425 = vmatpush.msra.mxu0 %v356
        %426 = vmatpush.msra.mxu0 %v355
        %427 = vmatpush.msra.mxu0 %v354
        %428 = vmatpush.msra.mxu0 %v353
        %429 = vmatpush.msra.mxu0 %v352
        %430 = vmatpush.msra.mxu0 %v351
        %431 = vmatpush.msra.mxu0 %v350
        %432 = vmatpush.msra.mxu0 %v349
        %433 = vmatmul.f32.gmra.mxu0 %v413
        %v434 = vpop.f32.mrf.mxu0
        %v435 = vadd.f32 0.0, %v434
        %436 = vdwg.mxu0
        %v437 = vadd.f32 %v416, %v435
        %v438 = vtanh.pop %v437
        %439 = vst [vmem:[%s415] sm:$0xff] %v438
        %s440 = scalar_lea.vmem %s216, 24 [#allocation11]
        %v441 = vld [vmem:[%s440] sm:$0xff]
        %442 = vmatpush.msra.mxu0 %v364
        %443 = vmatpush.msra.mxu0 %v363
        %444 = vmatpush.msra.mxu0 %v362
        %445 = vmatpush.msra.mxu0 %v361
        %446 = vmatpush.msra.mxu0 %v360
        %447 = vmatpush.msra.mxu0 %v359
        %448 = vmatpush.msra.mxu0 %v358
        %449 = vmatpush.msra.mxu0 %v357
        %450 = vmatpush.msra.mxu0 %v356
        %451 = vmatpush.msra.mxu0 %v355
        %452 = vmatpush.msra.mxu0 %v354
        %453 = vmatpush.msra.mxu0 %v353
        %454 = vmatpush.msra.mxu0 %v352
        %455 = vmatpush.msra.mxu0 %v351
        %456 = vmatpush.msra.mxu0 %v350
        %457 = vmatpush.msra.mxu0 %v349
        %458 = vmatmul.f32.gmra.mxu0 %v438
        %v459 = vpop.f32.mrf.mxu0
        %v460 = vadd.f32 0.0, %v459
        %461 = vdwg.mxu0
        %v462 = vadd.f32 %v441, %v460
        %v463 = vtanh.pop %v462
        %464 = vst [vmem:[%s440] sm:$0xff] %v463
        %465 = vst [vmem:[#allocation12] sm:$0xff] %v463
        %s466 = sand.u32 %s103, 1
        %s467 = scalar_lea.sflag [#allocation8], %s466
        %s468 = sand.u32 %s103, 1
        %s469 = smul.addr %s468, 32
        %s470 = scalar_lea.vmem [#allocation11], %s469
        // Predicated region
        $region78: #{tpu_custom_call.1} parent=31 // pred_check
          %p471 = pneg %p113
        $region79: #{tpu_custom_call.1} parent=31 // pred_check_branch
          %473 = sbr.rel (%p471) target = $region81
        $region80: #{tpu_custom_call.1} parent=31 // pred_region
          %s474 = smul.u32 4, %s32
          %476 = vsyncadd %s467, 0
          %s477 = smul.addr %s474, 8
          %s478 = scalar_lea.hbm %s5, %s477
          %s479 = sshll.u32 %s470, 4
          %s480 = int_to_ptr.vmem [resolvable:$true] %s479
          %s481 = sshll.u32 %s478, 4
          %s482 = int_to_ptr.hbm [resolvable:$true] %s481
          %487 = dma.vmem_to_hbm [thread:$0]  %s480, 512, %s482, %s467, 128, 128, 8
        $region81: #{tpu_custom_call.1} parent=31 // pred_fallthru
          _
        // Predicated region
        $region82: #{tpu_custom_call.1} parent=31 // pred_check
          %p488 = pneg %p134
        $region83: #{tpu_custom_call.1} parent=31 // pred_check_branch
          %490 = sbr.rel (%p488) target = $region85
        $region84: #{tpu_custom_call.1} parent=31 // pred_region
          %492 = vsyncadd [#allocation13], 0
          %s494 = sshll.u32 [#allocation12], 4
          %s495 = int_to_ptr.vmem [resolvable:$true] %s494
          %s496 = sshll.u32 %s6, 4
          %s497 = int_to_ptr.hbm [resolvable:$true] %s496
          %499 = dma.vmem_to_hbm [thread:$0]  %s495, 128, %s497, [#allocation13]
        $region85: #{tpu_custom_call.1} parent=31 // pred_fallthru
          _
        // Predicated region
        $region86: #{tpu_custom_call.1} parent=31 // pred_check
          %p500 = pneg %p134
        $region87: #{tpu_custom_call.1} parent=31 // pred_check_branch
          %502 = sbr.rel (%p500) target = $region89
        $region88: #{tpu_custom_call.1} parent=31 // pred_region
          %504 = dma.done [#allocation13], 128
        $region89: #{tpu_custom_call.1} parent=31 // pred_fallthru
          _
      $region32: #{tpu_custom_call.1} parent=5 // pred_fallthru
        _
      %p505 = scmp.le.s32.totalorder 2, %s27
      // Predicated region
      $region90: #{tpu_custom_call.1} parent=5 // pred_check
        %p506 = pneg %p505
      $region91: #{tpu_custom_call.1} parent=5 // pred_check_branch
        %508 = sbr.rel (%p506) target = $region93
      $region92: #{tpu_custom_call.1} parent=5 // pred_region
        %s509 = ssub.s32 %s27, 2
        // Predicated region
        $region94: #{tpu_custom_call.1} parent=92 // pred_check
          %p510 = pneg %p119
        $region95: #{tpu_custom_call.1} parent=92 // pred_check_branch
          %512 = sbr.rel (%p510) target = $region97
        $region96: #{tpu_custom_call.1} parent=92 // pred_region
          %s513 = sand.u32 %s104, 1
          %s514 = scalar_lea.sflag [#allocation8], %s513
          %s515 = sand.u32 %s104, 1
          %s516 = smul.addr %s515, 32
          %s517 = scalar_lea.vmem [#allocation11], %s516
          %519 = dma.done %s514, 512
        $region97: #{tpu_custom_call.1} parent=92 // pred_fallthru
          _
      $region93: #{tpu_custom_call.1} parent=5 // pred_fallthru
        _
    $region6: #{tpu_custom_call.1} parent=1 // loop_footer
      %s31 = sadd.s32 1, %s27
    $region7: #{tpu_custom_call.1} parent=1 // loop_footer_branch
      %26 = sbr.rel target = $region3
    $region8: #{tpu_custom_call.1} parent=1 // loop_exit
      _
    %520 = vsyncpa [#allocation7], 1
    %s521 = scalar_lea.sflag [#allocation7], 1
    %522 = vsyncpa %s521, 1
    %523 = vsyncpa [#allocation10], 1
    %524 = vsyncpa [#allocation8], 1
    %s525 = scalar_lea.sflag [#allocation8], 1
    %526 = vsyncpa %s525, 1
    %527 = vsyncpa [#allocation13], 1
  %528 = vsyncmov [#allocation3]
  %s529 = vpop.sfrf %528
  %p530 = scmp.eq.s32.totalorder %s529, 0
  %p531 = pneg %p530
  %533 = shalt.err (%p531)
  %s534 = scalar_lea.sflag [#allocation3], 1
  %535 = vsyncmov %s534
  %s536 = vpop.sfrf %535
  %p537 = scmp.eq.s32.totalorder %s536, 0
  %p538 = pneg %p537
  %540 = shalt.err (%p538)

</llo_original>
